<compile_context>
chip_gen: v6e
topology: v6e:2x2x1
jax: 0.10.0
libtpu: 0.0.40
codegen_flags: <defaults>
</compile_context>

<pallas_src>
import functools

import jax
import jax.numpy as jnp
from jax.experimental import pallas as pl
from jax.experimental.pallas import tpu as pltpu


def _round_up(x, m):
    return ((x + m - 1) // m) * m


def _cdiv(a, b):
    return (a + b - 1) // b


def decoder_kernel(x_ref, w_ref, b_ref, o_ref, *, n_layers, latent_dim):
    """Fused MLP (+ softplus head) on one (tile_b, latent_dim) batch tile.

    x_ref : (tile_b, latent_dim)     bf16  un-padded input activations
    w_ref : (n_layers, PAD, PAD)     bf16  packed, zero-padded weights ((in, out))
    b_ref : (n_layers, 1, PAD)       f32   packed, zero-padded biases
    o_ref : (tile_b, PAD)            f32   interleaved [mean, softplus(var)+1e-6, ...]
    """
    h = x_ref[...]                                            # bf16

    # First layer against a static ref-view slice (zero-cost, only latent_dim rows).
    w0 = w_ref[0, :latent_dim, :]
    acc = jnp.dot(h, w0, preferred_element_type=jnp.float32)
    h = jnp.maximum(acc + b_ref[0], 0.0).astype(jnp.bfloat16)

    # Remaining hidden layers (padded lanes stay exactly 0: zero weights + zero bias).
    for l in range(1, n_layers - 1):
        acc = jnp.dot(h, w_ref[l], preferred_element_type=jnp.float32)
        h = jnp.maximum(acc + b_ref[l], 0.0).astype(jnp.bfloat16)

    out = jnp.dot(h, w_ref[n_layers - 1],
                  preferred_element_type=jnp.float32) + b_ref[n_layers - 1]

    # Interleaved head: even lanes = mean (identity), odd lanes = softplus(var)+1e-6.
    # Stable softplus: max(x, 0) + log1p(exp(-|x|)).
    sp = jnp.maximum(out, 0.0) + jnp.log1p(jnp.exp(-jnp.abs(out))) + 1e-6
    lane = jax.lax.broadcasted_iota(jnp.int32, out.shape, 1)
    o_ref[...] = jnp.where((lane & 1) == 1, sp, out)


def make_params(key, latent_dim, output_dim, n_layers=4):
    """Deterministic synthetic parameters matching the PyTorch module's shapes.

    Weights are stored (in_features, out_features) so forward is x @ W + b
    (== PyTorch x @ W_pt.T).  Final layer columns are interleaved
    (mean_0, var_0, mean_1, var_1, ...) exactly like the PyTorch module.
    """
    dist_dim = 2 * output_dim
    transition_step = (dist_dim - latent_dim) // n_layers
    n_f = lambda i: latent_dim + transition_step * i

    dims = [(n_f(i), n_f(i + 1)) for i in range(n_layers - 1)]
    dims.append((n_f(n_layers - 1), dist_dim))

    params = []
    for (fan_in, fan_out) in dims:
        key, kw, kb = jax.random.split(key, 3)
        w = jax.random.normal(kw, (fan_in, fan_out), jnp.float32) * 0.1
        b = jax.random.normal(kb, (1, fan_out), jnp.float32) * 0.01
        params.append((w, b))
    return params


def pack_params(params, pad):
    """Zero-pad every layer to (pad, pad) and pack into single W / b arrays.
    Final-layer columns keep their interleaved (mean, var) order."""
    n_layers = len(params)
    W = jnp.zeros((n_layers, pad, pad), jnp.float32)
    B = jnp.zeros((n_layers, 1, pad), jnp.float32)
    for l, (w, b) in enumerate(params):
        W = W.at[l, :w.shape[0], :w.shape[1]].set(w)
        B = B.at[l, 0, :b.shape[1]].set(b.reshape(-1))
    # bf16 weights for the MXU; biases stay f32 (added post-accumulation).
    return W.astype(jnp.bfloat16), B


def _pick_tile_b(batch, tile_b):
    """Batch tile: large tiles for DMA efficiency, >=2 grid steps when the
    batch is big enough (v7x megacore), 16-row sublane alignment for bf16."""
    tile_b = _round_up(min(tile_b, 4096), 16)
    if batch <= tile_b:
        if batch >= 32:
            tile_b = _round_up(_cdiv(batch, 2), 16)   # >=2 grid steps
        else:
            tile_b = _round_up(batch, 8)              # single exact/near-exact block
    return tile_b


def sigma_gauss_var_decoder(x, params, output_dim, *, tile_b=4096):
    """Wrapper: one batch-gridded pallas_call + a free reshape in plain JAX."""
    n_layers = len(params)
    assert n_layers >= 2, "kernel assumes >=1 hidden layer + 1 output layer"
    batch, latent_dim = x.shape
    dist_dim = 2 * output_dim

    # Common padded feature width (multiple of 128 lanes) for hidden/output layers.
    widths = [w.shape[1] for (w, _) in params]
    pad = _round_up(max(widths + [128]), 128)

    w_packed, b_packed = pack_params(params, pad)

    tile_b = _pick_tile_b(batch, tile_b)
    grid = (_cdiv(batch, tile_b),)    # no batch round-up; last block may be partial

    x_bf16 = x.astype(jnp.bfloat16)

    kernel = functools.partial(decoder_kernel,
                               n_layers=n_layers, latent_dim=latent_dim)

    flops = 2 * batch * (latent_dim * pad + (n_layers - 1) * pad * pad)
    transcendentals = 2 * batch * pad                       # exp + log1p, full width
    bytes_accessed = (x_bf16.size * 2 + w_packed.size * 2
                      + b_packed.size * 4 + batch * pad * 4)

    out_flat = pl.pallas_call(
        kernel,
        out_shape=jax.ShapeDtypeStruct((batch, pad), jnp.float32),
        grid=grid,
        in_specs=[
            # x at its true feature width (last dim == full array dim -> legal)
            pl.BlockSpec((tile_b, latent_dim), lambda i: (i, 0)),
            pl.BlockSpec((n_layers, pad, pad), lambda i: (0, 0, 0)),  # weights (resident)
            pl.BlockSpec((n_layers, 1, pad), lambda i: (0, 0, 0)),    # biases  (resident)
        ],
        out_specs=pl.BlockSpec((tile_b, pad), lambda i: (i, 0)),
        compiler_params=pltpu.CompilerParams(
            dimension_semantics=("parallel",)),
        cost_estimate=pl.CostEstimate(
            flops=flops,
            transcendentals=transcendentals,
            bytes_accessed=bytes_accessed),
    )(x_bf16, w_packed, b_packed)

    if pad != dist_dim:
        out_flat = out_flat[:, :dist_dim]
    res = out_flat.reshape(batch, output_dim, 2)     # free: kernel output is interleaved
    # NOTE: mirrors PyTorch's trailing .squeeze() (drops all size-1 dims).
    return jnp.squeeze(res)


def reference_forward_f32(x, params, output_dim):
    """Pure-JAX f32 reference matching the PyTorch forward exactly."""
    h = x
    for (w, b) in params[:-1]:
        h = jnp.maximum(h @ w + b, 0.0)
    w, b = params[-1]
    out = (h @ w + b).reshape(-1, output_dim, 2)
    mean = out[..., 0]
    sigma = jax.nn.softplus(out[..., 1]) + 1e-6
    return jnp.squeeze(jnp.stack([mean, sigma], axis=-1))


def reference_forward_bf16(x, params, output_dim):
    """Reference reproducing the kernel's math: bf16 dot inputs, f32 accumulation."""
    h = x.astype(jnp.bfloat16)
    for (w, b) in params[:-1]:
        acc = jnp.dot(h, w.astype(jnp.bfloat16),
                      preferred_element_type=jnp.float32)
        h = jnp.maximum(acc + b, 0.0).astype(jnp.bfloat16)
    w, b = params[-1]
    out = jnp.dot(h, w.astype(jnp.bfloat16),
                  preferred_element_type=jnp.float32) + b
    out = out.reshape(-1, output_dim, 2)
    mean = out[..., 0]
    sigma = jax.nn.softplus(out[..., 1]) + 1e-6
    return jnp.squeeze(jnp.stack([mean, sigma], axis=-1))


if __name__ == "__main__":
    # latent_dim=32, output_dim=64 -> dist_dim=128, n_layers=4
    # layer widths: 32 -> 56 -> 80 -> 104 -> 128
    latent_dim = 32
    output_dim = 64
    n_layers = 4
    batch = 8

    key = jax.random.PRNGKey(0)
    key, kx = jax.random.split(key)
    x = jax.random.normal(kx, (batch, latent_dim), jnp.float32)
    params = make_params(key, latent_dim, output_dim, n_layers)

    out = sigma_gauss_var_decoder(x, params, output_dim)
    out = jax.block_until_ready(out)

    ref16 = reference_forward_bf16(x, params, output_dim)
    ref32 = reference_forward_f32(x, params, output_dim)
    assert out.shape == ref32.shape, (out.shape, ref32.shape)
    assert jnp.allclose(out, ref16, atol=2e-3, rtol=2e-3), "mismatch vs bf16-math reference"
    assert jnp.allclose(out, ref32, atol=3e-2, rtol=3e-2), "mismatch vs f32 reference"

    print("KERNEL_OK")
</pallas_src>

<mosaic_0001>
module attributes {stable_mosaic.version = 11 : i64} {
  func.func @decoder_kernel(%arg0: i32, %arg1: memref<8x32xbf16, #tpu.memory_space<vmem>>, %arg2: memref<4x128x128xbf16, #tpu.memory_space<vmem>>, %arg3: memref<4x1x128xf32, #tpu.memory_space<vmem>>, %arg4: memref<8x128xf32, #tpu.memory_space<vmem>>) attributes {dimension_semantics = [#tpu.dimension_semantics<parallel>], iteration_bounds = array<i64: 1>, scalar_prefetch = 0 : i64, scratch_operands = 0 : i64, tpu.core_type = #tpu.core_type<tc>, window_params = [{transform_indices = @transform_0, window_bounds = array<i64: 8, 32>}, {pipeline_mode = #tpu.pipeline_mode<synchronous>, transform_indices = @transform_1, window_bounds = array<i64: 4, 128, 128>}, {pipeline_mode = #tpu.pipeline_mode<synchronous>, transform_indices = @transform_2, window_bounds = array<i64: 4, 1, 128>}, {transform_indices = @transform_3, window_bounds = array<i64: 8, 128>}]} {
    %c0 = arith.constant 0 : index
    %c0_0 = arith.constant 0 : index
    %0 = vector.load %arg1[%c0, %c0_0] : memref<8x32xbf16, #tpu.memory_space<vmem>>, vector<8x32xbf16>
    %c0_1 = arith.constant 0 : index
    %c0_2 = arith.constant 0 : index
    %c0_3 = arith.constant 0 : index
    %1 = vector.load %arg2[%c0_1, %c0_2, %c0_3] : memref<4x128x128xbf16, #tpu.memory_space<vmem>>, vector<1x32x128xbf16>
    %2 = vector.shape_cast %1 : vector<1x32x128xbf16> to vector<32x128xbf16>
    %cst = arith.constant dense<0.000000e+00> : vector<8x128xf32>
    %3 = tpu.matmul %0, %2, %cst {dimension_numbers = #tpu.dot_dimension_numbers<[1], [0], [0], [1], [0, 0, 1, 1], [], []>} : vector<8x32xbf16>, vector<32x128xbf16>, vector<8x128xf32> -> vector<8x128xf32>
    %c0_4 = arith.constant 0 : index
    %c0_5 = arith.constant 0 : index
    %c0_6 = arith.constant 0 : index
    %4 = vector.load %arg3[%c0_4, %c0_5, %c0_6] : memref<4x1x128xf32, #tpu.memory_space<vmem>>, vector<1x1x128xf32>
    %5 = vector.shape_cast %4 : vector<1x1x128xf32> to vector<1x128xf32>
    %6 = vector.broadcast %5 : vector<1x128xf32> to vector<8x128xf32>
    %7 = arith.addf %3, %6 : vector<8x128xf32>
    %cst_7 = arith.constant 0.000000e+00 : f32
    %8 = vector.broadcast %cst_7 : f32 to vector<8x128xf32>
    %9 = arith.maximumf %7, %8 : vector<8x128xf32>
    %10 = arith.truncf %9 : vector<8x128xf32> to vector<8x128xbf16>
    %c1 = arith.constant 1 : index
    %c0_8 = arith.constant 0 : index
    %c0_9 = arith.constant 0 : index
    %11 = vector.load %arg2[%c1, %c0_8, %c0_9] : memref<4x128x128xbf16, #tpu.memory_space<vmem>>, vector<1x128x128xbf16>
    %12 = vector.shape_cast %11 : vector<1x128x128xbf16> to vector<128x128xbf16>
    %cst_10 = arith.constant dense<0.000000e+00> : vector<8x128xf32>
    %13 = tpu.matmul %10, %12, %cst_10 {dimension_numbers = #tpu.dot_dimension_numbers<[1], [0], [0], [1], [0, 0, 1, 1], [], []>} : vector<8x128xbf16>, vector<128x128xbf16>, vector<8x128xf32> -> vector<8x128xf32>
    %c1_11 = arith.constant 1 : index
    %c0_12 = arith.constant 0 : index
    %c0_13 = arith.constant 0 : index
    %14 = vector.load %arg3[%c1_11, %c0_12, %c0_13] : memref<4x1x128xf32, #tpu.memory_space<vmem>>, vector<1x1x128xf32>
    %15 = vector.shape_cast %14 : vector<1x1x128xf32> to vector<1x128xf32>
    %16 = vector.broadcast %15 : vector<1x128xf32> to vector<8x128xf32>
    %17 = arith.addf %13, %16 : vector<8x128xf32>
    %cst_14 = arith.constant 0.000000e+00 : f32
    %18 = vector.broadcast %cst_14 : f32 to vector<8x128xf32>
    %19 = arith.maximumf %17, %18 : vector<8x128xf32>
    %20 = arith.truncf %19 : vector<8x128xf32> to vector<8x128xbf16>
    %c2 = arith.constant 2 : index
    %c0_15 = arith.constant 0 : index
    %c0_16 = arith.constant 0 : index
    %21 = vector.load %arg2[%c2, %c0_15, %c0_16] : memref<4x128x128xbf16, #tpu.memory_space<vmem>>, vector<1x128x128xbf16>
    %22 = vector.shape_cast %21 : vector<1x128x128xbf16> to vector<128x128xbf16>
    %cst_17 = arith.constant dense<0.000000e+00> : vector<8x128xf32>
    %23 = tpu.matmul %20, %22, %cst_17 {dimension_numbers = #tpu.dot_dimension_numbers<[1], [0], [0], [1], [0, 0, 1, 1], [], []>} : vector<8x128xbf16>, vector<128x128xbf16>, vector<8x128xf32> -> vector<8x128xf32>
    %c2_18 = arith.constant 2 : index
    %c0_19 = arith.constant 0 : index
    %c0_20 = arith.constant 0 : index
    %24 = vector.load %arg3[%c2_18, %c0_19, %c0_20] : memref<4x1x128xf32, #tpu.memory_space<vmem>>, vector<1x1x128xf32>
    %25 = vector.shape_cast %24 : vector<1x1x128xf32> to vector<1x128xf32>
    %26 = vector.broadcast %25 : vector<1x128xf32> to vector<8x128xf32>
    %27 = arith.addf %23, %26 : vector<8x128xf32>
    %cst_21 = arith.constant 0.000000e+00 : f32
    %28 = vector.broadcast %cst_21 : f32 to vector<8x128xf32>
    %29 = arith.maximumf %27, %28 : vector<8x128xf32>
    %30 = arith.truncf %29 : vector<8x128xf32> to vector<8x128xbf16>
    %c3 = arith.constant 3 : index
    %c0_22 = arith.constant 0 : index
    %c0_23 = arith.constant 0 : index
    %31 = vector.load %arg2[%c3, %c0_22, %c0_23] : memref<4x128x128xbf16, #tpu.memory_space<vmem>>, vector<1x128x128xbf16>
    %32 = vector.shape_cast %31 : vector<1x128x128xbf16> to vector<128x128xbf16>
    %cst_24 = arith.constant dense<0.000000e+00> : vector<8x128xf32>
    %33 = tpu.matmul %30, %32, %cst_24 {dimension_numbers = #tpu.dot_dimension_numbers<[1], [0], [0], [1], [0, 0, 1, 1], [], []>} : vector<8x128xbf16>, vector<128x128xbf16>, vector<8x128xf32> -> vector<8x128xf32>
    %c3_25 = arith.constant 3 : index
    %c0_26 = arith.constant 0 : index
    %c0_27 = arith.constant 0 : index
    %34 = vector.load %arg3[%c3_25, %c0_26, %c0_27] : memref<4x1x128xf32, #tpu.memory_space<vmem>>, vector<1x1x128xf32>
    %35 = vector.shape_cast %34 : vector<1x1x128xf32> to vector<1x128xf32>
    %36 = vector.broadcast %35 : vector<1x128xf32> to vector<8x128xf32>
    %37 = arith.addf %33, %36 : vector<8x128xf32>
    %cst_28 = arith.constant 0.000000e+00 : f32
    %38 = vector.broadcast %cst_28 : f32 to vector<8x128xf32>
    %39 = arith.maximumf %37, %38 : vector<8x128xf32>
    %40 = math.absf %37 : vector<8x128xf32>
    %cst_29 = arith.constant 0.000000e+00 : f32
    %41 = vector.broadcast %cst_29 : f32 to vector<8x128xf32>
    %42 = arith.subf %41, %40 : vector<8x128xf32>
    %43 = math.exp %42 : vector<8x128xf32>
    %44 = math.log1p %43 : vector<8x128xf32>
    %45 = arith.addf %39, %44 : vector<8x128xf32>
    %cst_30 = arith.constant 9.99999997E-7 : f32
    %46 = vector.broadcast %cst_30 : f32 to vector<8x128xf32>
    %47 = arith.addf %45, %46 : vector<8x128xf32>
    %48 = tpu.iota {dimensions = array<i32: 1>} : vector<8x128xi32>
    %c1_i32 = arith.constant 1 : i32
    %49 = vector.broadcast %c1_i32 : i32 to vector<8x128xi32>
    %50 = arith.andi %48, %49 : vector<8x128xi32>
    %c1_i32_31 = arith.constant 1 : i32
    %51 = vector.broadcast %c1_i32_31 : i32 to vector<8x128xi32>
    %52 = arith.cmpi eq, %50, %51 : vector<8x128xi32>
    %53 = arith.select %52, %47, %37 : vector<8x128xi1>, vector<8x128xf32>
    %c0_32 = arith.constant 0 : index
    %c0_33 = arith.constant 0 : index
    %54 = vector.load %arg4[%c0_32, %c0_33] : memref<8x128xf32, #tpu.memory_space<vmem>>, vector<8x128xf32>
    tpu.vector_store %arg4[%c0_32, %c0_33], %53 {strides = array<i32>} : memref<8x128xf32, #tpu.memory_space<vmem>>, vector<8x128xf32>,
    return
  }
  func.func @transform_0(%arg0: i32) -> (i32, i32) {
    %c0_i32 = arith.constant 0 : i32
    %c0_i32_0 = arith.constant 0 : i32
    return %arg0, %c0_i32 : i32, i32
  }
  func.func @transform_1(%arg0: i32) -> (i32, i32, i32) {
    %c0_i32 = arith.constant 0 : i32
    %c0_i32_0 = arith.constant 0 : i32
    %c0_i32_1 = arith.constant 0 : i32
    %c0_i32_2 = arith.constant 0 : i32
    return %c0_i32, %c0_i32_0, %c0_i32_1 : i32, i32, i32
  }
  func.func @transform_2(%arg0: i32) -> (i32, i32, i32) {
    %c0_i32 = arith.constant 0 : i32
    %c0_i32_0 = arith.constant 0 : i32
    %c0_i32_1 = arith.constant 0 : i32
    %c0_i32_2 = arith.constant 0 : i32
    return %c0_i32, %c0_i32_0, %c0_i32_1 : i32, i32, i32
  }
  func.func @transform_3(%arg0: i32) -> (i32, i32) {
    %c0_i32 = arith.constant 0 : i32
    %c0_i32_0 = arith.constant 0 : i32
    return %arg0, %c0_i32 : i32, i32
  }
}

</mosaic_0001>

<llo_original>
// kernel: tpu_custom_call.1
$region0: #{tpu_custom_call.1}
  #allocation0 [shape = 'u32[]', space=smem, size = 0x4, offset = 0x4, fixed_abs, tag = 'smem constant byte address 0x4 - core index']
  #allocation1 [shape = 'u32[144,128]{1,0:T(1,128)}', space=vmem, size = 0x12000, scoped, tag = 'internal scratch']
  %s0 = inlined_call_operand.hbm [shape: bf16[8,32], index: 0, kind: input, shape index: {}]
  %s1 = inlined_call_operand.hbm [shape: bf16[4,128,128], index: 1, kind: input, shape index: {}]
  %s2 = inlined_call_operand.hbm [shape: f32[4,1,128], index: 2, kind: input, shape index: {}]
  %s3 = inlined_call_operand.hbm [shape: f32[8,128], index: 3, kind: output, shape index: {}]
  %s4 = sld [smem:[#allocation0]]
  $region34: #{tpu_custom_call.1} parent=0
    _
  %s6 = ssub.s32 1, %s4
  %s7 = scalar_select 0, %s6, %s4
  $region1: #{tpu_custom_call.1} parent=0
    #allocation2 [shape = 'u8[2048]{0}', space=vmem, size = 0x800, scoped, tag = 'input window, operand 0, single buffered']
    #allocation3 [shape = 's32[1]{0}', space=sflag, size = 0x4, scoped, tag = 'scoped memory for tpu_custom_call.1']
    #allocation4 [shape = 's32[1]{0}', space=sflag, size = 0x4, scoped, tag = 'scoped memory for tpu_custom_call.1']
    #allocation5 [shape = 'u8[131072]{0}', space=vmem, size = 0x20000, scoped, tag = 'input window, operand 1, single buffered']
    #allocation6 [shape = 's32[1]{0}', space=sflag, size = 0x4, scoped, tag = 'scoped memory for tpu_custom_call.1']
    #allocation7 [shape = 'u8[2048]{0}', space=vmem, size = 0x800, scoped, tag = 'input window, operand 2, single buffered']
    #allocation8 [shape = 'u8[4096]{0}', space=vmem, size = 0x1000, scoped, tag = 'output window, operand 0, single buffered']
    %8 = vsyncpa [#allocation3], 0
    %9 = vsyncpa [#allocation6], 0
    %10 = vsyncpa [#allocation4], 0
    // Predicated region
    $region2: #{tpu_custom_call.1} parent=1 // pred_check
      _
    $region3: #{tpu_custom_call.1} parent=1 // pred_check_branch
      %12 = sbr.rel (0) target = $region5
    $region4: #{tpu_custom_call.1} parent=1 // pred_region
      %s14 = ssub.s32 64, 64
      %15 = vsyncadd [#allocation3], %s14
      %s17 = sshll.u32 [#allocation2], 4
      %s18 = int_to_ptr.vmem [resolvable:$true] %s17
      %20 = dma.hbm_to_vmem [thread:$0]  %s0, 64, %s18, [#allocation3]
    $region5: #{tpu_custom_call.1} parent=1 // pred_fallthru
      _
    // Predicated region
    $region6: #{tpu_custom_call.1} parent=1 // pred_check
      _
    $region7: #{tpu_custom_call.1} parent=1 // pred_check_branch
      %22 = sbr.rel (0) target = $region9
    $region8: #{tpu_custom_call.1} parent=1 // pred_region
      %s24 = ssub.s32 4096, 4096
      %25 = vsyncadd [#allocation6], %s24
      %s26 = sshll.u32 [#allocation5], 4
      %s27 = int_to_ptr.vmem [resolvable:$true] %s26
      %32 = dma.hbm_to_vmem [thread:$0]  %s1, 4096, %s27, [#allocation6], 64, 64, 4
    $region9: #{tpu_custom_call.1} parent=1 // pred_fallthru
      _
    // Predicated region
    $region10: #{tpu_custom_call.1} parent=1 // pred_check
      _
    $region11: #{tpu_custom_call.1} parent=1 // pred_check_branch
      %34 = sbr.rel (0) target = $region13
    $region12: #{tpu_custom_call.1} parent=1 // pred_region
      %s36 = ssub.s32 64, 64
      %37 = vsyncadd [#allocation6], %s36
      %s38 = sshll.u32 [#allocation7], 4
      %s39 = int_to_ptr.vmem [resolvable:$true] %s38
      %44 = dma.hbm_to_vmem [thread:$0]  %s2, 64, %s39, [#allocation6], 16, 16, 1
    $region13: #{tpu_custom_call.1} parent=1 // pred_fallthru
      _
    // Predicated region
    $region14: #{tpu_custom_call.1} parent=1 // pred_check
      _
    $region15: #{tpu_custom_call.1} parent=1 // pred_check_branch
      %46 = sbr.rel (0) target = $region17
    $region16: #{tpu_custom_call.1} parent=1 // pred_region
      %47 = dma.done [#allocation3], 64
    $region17: #{tpu_custom_call.1} parent=1 // pred_fallthru
      _
    // Predicated region
    $region18: #{tpu_custom_call.1} parent=1 // pred_check
      _
    $region19: #{tpu_custom_call.1} parent=1 // pred_check_branch
      %49 = sbr.rel (0) target = $region21
    $region20: #{tpu_custom_call.1} parent=1 // pred_region
      %50 = dma.done [#allocation6], 4096
    $region21: #{tpu_custom_call.1} parent=1 // pred_fallthru
      _
    // Predicated region
    $region22: #{tpu_custom_call.1} parent=1 // pred_check
      _
    $region23: #{tpu_custom_call.1} parent=1 // pred_check_branch
      %52 = sbr.rel (0) target = $region25
    $region24: #{tpu_custom_call.1} parent=1 // pred_region
      %53 = dma.done [#allocation6], 64
    $region25: #{tpu_custom_call.1} parent=1 // pred_fallthru
      _
    %v55 = vld [vmem:[#allocation2] sm:$0xf]
    %v56 = vld [vmem:[#allocation5] sm:$0xf]
    %v57 = vld [vmem:[#allocation5 + $0x4] sm:$0xf]
    %v58 = vld [vmem:[#allocation5 + $0x8] sm:$0xf]
    %v59 = vld [vmem:[#allocation5 + $0xc] sm:$0xf]
    %v60 = vld [vmem:[#allocation7] sm:$0x1]
    %v62 = vlaneseq
    %v63 = vshrl.u32 %v62, 7
    %v64 = vsub.s32 0, %v63
    %v65 = vrot.slane %v60, %v64
    %v71 = vunpack.c.l.b16 %v56
    %v72 = vunpack.c.l.b16 %v57
    %v73 = vunpack.c.l.b16 %v58
    %v74 = vunpack.c.l.b16 %v59
    %v75 = vpack.c.b16 %v72, %v71
    %v76 = vpack.c.b16 %v74, %v73
    %vm79 = vcmask 261120
    %v81 = vsel %vm79, %v55, 0
    %83 = vmatprep.subr.bf16.mxu0 0
    %84 = vmatpush1.bf16.msra.mxu0 0
    %85 = vmatprep.subr.bf16.mxu0 0
    %86 = vmatpush1.bf16.msra.mxu0 0
    %87 = vmatprep.subr.bf16.mxu0 0
    %88 = vmatpush1.bf16.msra.mxu0 0
    %89 = vmatprep.subr.bf16.mxu0 0
    %90 = vmatpush1.bf16.msra.mxu0 0
    %91 = vmatprep.subr.bf16.mxu0 0
    %92 = vmatpush1.bf16.msra.mxu0 0
    %93 = vmatprep.subr.bf16.mxu0 0
    %94 = vmatpush1.bf16.msra.mxu0 0
    %95 = vmatprep.subr.bf16.mxu0 0
    %96 = vmatpush1.bf16.msra.mxu0 %v76
    %97 = vmatprep.subr.bf16.mxu0 0
    %98 = vmatpush1.bf16.msra.mxu0 %v75
    %99 = vmatprep.subr.bf16.mxu0 0
    %100 = vmatpush2.bf16.msra.mxu0 0
    %101 = vmatprep.subr.bf16.mxu0 0
    %102 = vmatpush2.bf16.msra.mxu0 0
    %103 = vmatprep.subr.bf16.mxu0 0
    %104 = vmatpush2.bf16.msra.mxu0 0
    %105 = vmatprep.subr.bf16.mxu0 0
    %106 = vmatpush2.bf16.msra.mxu0 0
    %107 = vmatprep.subr.bf16.mxu0 0
    %108 = vmatpush2.bf16.msra.mxu0 0
    %109 = vmatprep.subr.bf16.mxu0 0
    %110 = vmatpush2.bf16.msra.mxu0 0
    %111 = vmatprep.subr.bf16.mxu0 0
    %112 = vmatpush2.bf16.msra.mxu0 0
    %113 = vmatprep.subr.bf16.mxu0 0
    %114 = vmatpush2.bf16.msra.mxu0 0
    %115 = vmatprep.mubr.bf16.mxu0 0
    %116 = vmatmul.mubr.bf16.gmra.mxu0 %v81
    %v117 = vpop.f32.mrf.mxu0
    %v118 = vadd.f32 %v65, %v117
    %v119 = vpop.f32.mrf.mxu0
    %v120 = vpop.f32.mrf.mxu0
    %v121 = vpop.f32.mrf.mxu0
    %122 = vdwg.mxu0
    %v123 = vmax.f32 %v118, 0.0
    %v124 = vpack.c.bf16 %v123, %v123
    %s125 = scalar_lea.vmem [#allocation5], 64
    %v126 = vld [vmem:[%s125] sm:$0xf]
    %v127 = vld [vmem:[%s125 + $0x4] sm:$0xf]
    %v128 = vld [vmem:[%s125 + $0x8] sm:$0xf]
    %v129 = vld [vmem:[%s125 + $0xc] sm:$0xf]
    %v130 = vld [vmem:[%s125 + $0x10] sm:$0xf]
    %v131 = vld [vmem:[%s125 + $0x14] sm:$0xf]
    %v132 = vld [vmem:[%s125 + $0x18] sm:$0xf]
    %v133 = vld [vmem:[%s125 + $0x1c] sm:$0xf]
    %v134 = vld [vmem:[%s125 + $0x20] sm:$0xf]
    %v135 = vld [vmem:[%s125 + $0x24] sm:$0xf]
    %v136 = vld [vmem:[%s125 + $0x28] sm:$0xf]
    %v137 = vld [vmem:[%s125 + $0x2c] sm:$0xf]
    %v138 = vld [vmem:[%s125 + $0x30] sm:$0xf]
    %v139 = vld [vmem:[%s125 + $0x34] sm:$0xf]
    %v140 = vld [vmem:[%s125 + $0x38] sm:$0xf]
    %v141 = vld [vmem:[%s125 + $0x3c] sm:$0xf]
    %s142 = scalar_lea.vmem [#allocation7], 1
    %v143 = vld [vmem:[%s142] sm:$0x1]
    %v145 = vlaneseq
    %v146 = vshrl.u32 %v145, 7
    %v147 = vsub.s32 0, %v146
    %v148 = vrot.slane %v143, %v147
    %v166 = vunpack.c.l.b16 %v126
    %v167 = vunpack.c.l.b16 %v127
    %v168 = vunpack.c.l.b16 %v128
    %v169 = vunpack.c.l.b16 %v129
    %v170 = vunpack.c.l.b16 %v130
    %v171 = vunpack.c.l.b16 %v131
    %v172 = vunpack.c.l.b16 %v132
    %v173 = vunpack.c.l.b16 %v133
    %v174 = vunpack.c.l.b16 %v134
    %v175 = vunpack.c.l.b16 %v135
    %v176 = vunpack.c.l.b16 %v136
    %v177 = vunpack.c.l.b16 %v137
    %v178 = vunpack.c.l.b16 %v138
    %v179 = vunpack.c.l.b16 %v139
    %v180 = vunpack.c.l.b16 %v140
    %v181 = vunpack.c.l.b16 %v141
    %v182 = vpack.c.b16 %v167, %v166
    %v183 = vpack.c.b16 %v169, %v168
    %v184 = vpack.c.b16 %v171, %v170
    %v185 = vpack.c.b16 %v173, %v172
    %v186 = vpack.c.b16 %v175, %v174
    %v187 = vpack.c.b16 %v177, %v176
    %v188 = vpack.c.b16 %v179, %v178
    %v189 = vpack.c.b16 %v181, %v180
    %198 = vmatprep.subr.bf16.mxu0 0
    %199 = vmatpush1.bf16.msra.mxu0 %v189
    %200 = vmatprep.subr.bf16.mxu0 0
    %201 = vmatpush1.bf16.msra.mxu0 %v188
    %202 = vmatprep.subr.bf16.mxu0 0
    %203 = vmatpush1.bf16.msra.mxu0 %v187
    %204 = vmatprep.subr.bf16.mxu0 0
    %205 = vmatpush1.bf16.msra.mxu0 %v186
    %206 = vmatprep.subr.bf16.mxu0 0
    %207 = vmatpush1.bf16.msra.mxu0 %v185
    %208 = vmatprep.subr.bf16.mxu0 0
    %209 = vmatpush1.bf16.msra.mxu0 %v184
    %210 = vmatprep.subr.bf16.mxu0 0
    %211 = vmatpush1.bf16.msra.mxu0 %v183
    %212 = vmatprep.subr.bf16.mxu0 0
    %213 = vmatpush1.bf16.msra.mxu0 %v182
    %214 = vmatprep.subr.bf16.mxu0 0
    %215 = vmatpush2.bf16.msra.mxu0 0
    %216 = vmatprep.subr.bf16.mxu0 0
    %217 = vmatpush2.bf16.msra.mxu0 0
    %218 = vmatprep.subr.bf16.mxu0 0
    %219 = vmatpush2.bf16.msra.mxu0 0
    %220 = vmatprep.subr.bf16.mxu0 0
    %221 = vmatpush2.bf16.msra.mxu0 0
    %222 = vmatprep.subr.bf16.mxu0 0
    %223 = vmatpush2.bf16.msra.mxu0 0
    %224 = vmatprep.subr.bf16.mxu0 0
    %225 = vmatpush2.bf16.msra.mxu0 0
    %226 = vmatprep.subr.bf16.mxu0 0
    %227 = vmatpush2.bf16.msra.mxu0 0
    %228 = vmatprep.subr.bf16.mxu0 0
    %229 = vmatpush2.bf16.msra.mxu0 0
    %230 = vmatprep.mubr.bf16.mxu0 0
    %231 = vmatmul.mubr.bf16.gmra.mxu0 %v124
    %v232 = vpop.f32.mrf.mxu0
    %v233 = vadd.f32 %v148, %v232
    %v234 = vpop.f32.mrf.mxu0
    %v235 = vpop.f32.mrf.mxu0
    %v236 = vpop.f32.mrf.mxu0
    %237 = vdwg.mxu0
    %v238 = vmax.f32 %v233, 0.0
    %v239 = vpack.c.bf16 %v238, %v238
    %s240 = scalar_lea.vmem [#allocation5], 128
    %v241 = vld [vmem:[%s240] sm:$0xf]
    %v242 = vld [vmem:[%s240 + $0x4] sm:$0xf]
    %v243 = vld [vmem:[%s240 + $0x8] sm:$0xf]
    %v244 = vld [vmem:[%s240 + $0xc] sm:$0xf]
    %v245 = vld [vmem:[%s240 + $0x10] sm:$0xf]
    %v246 = vld [vmem:[%s240 + $0x14] sm:$0xf]
    %v247 = vld [vmem:[%s240 + $0x18] sm:$0xf]
    %v248 = vld [vmem:[%s240 + $0x1c] sm:$0xf]
    %v249 = vld [vmem:[%s240 + $0x20] sm:$0xf]
    %v250 = vld [vmem:[%s240 + $0x24] sm:$0xf]
    %v251 = vld [vmem:[%s240 + $0x28] sm:$0xf]
    %v252 = vld [vmem:[%s240 + $0x2c] sm:$0xf]
    %v253 = vld [vmem:[%s240 + $0x30] sm:$0xf]
    %v254 = vld [vmem:[%s240 + $0x34] sm:$0xf]
    %v255 = vld [vmem:[%s240 + $0x38] sm:$0xf]
    %v256 = vld [vmem:[%s240 + $0x3c] sm:$0xf]
    %s257 = scalar_lea.vmem [#allocation7], 2
    %v258 = vld [vmem:[%s257] sm:$0x1]
    %v260 = vlaneseq
    %v261 = vshrl.u32 %v260, 7
    %v262 = vsub.s32 0, %v261
    %v263 = vrot.slane %v258, %v262
    %v281 = vunpack.c.l.b16 %v241
    %v282 = vunpack.c.l.b16 %v242
    %v283 = vunpack.c.l.b16 %v243
    %v284 = vunpack.c.l.b16 %v244
    %v285 = vunpack.c.l.b16 %v245
    %v286 = vunpack.c.l.b16 %v246
    %v287 = vunpack.c.l.b16 %v247
    %v288 = vunpack.c.l.b16 %v248
    %v289 = vunpack.c.l.b16 %v249
    %v290 = vunpack.c.l.b16 %v250
    %v291 = vunpack.c.l.b16 %v251
    %v292 = vunpack.c.l.b16 %v252
    %v293 = vunpack.c.l.b16 %v253
    %v294 = vunpack.c.l.b16 %v254
    %v295 = vunpack.c.l.b16 %v255
    %v296 = vunpack.c.l.b16 %v256
    %v297 = vpack.c.b16 %v282, %v281
    %v298 = vpack.c.b16 %v284, %v283
    %v299 = vpack.c.b16 %v286, %v285
    %v300 = vpack.c.b16 %v288, %v287
    %v301 = vpack.c.b16 %v290, %v289
    %v302 = vpack.c.b16 %v292, %v291
    %v303 = vpack.c.b16 %v294, %v293
    %v304 = vpack.c.b16 %v296, %v295
    %313 = vmatprep.subr.bf16.mxu0 0
    %314 = vmatpush1.bf16.msra.mxu0 %v304
    %315 = vmatprep.subr.bf16.mxu0 0
    %316 = vmatpush1.bf16.msra.mxu0 %v303
    %317 = vmatprep.subr.bf16.mxu0 0
    %318 = vmatpush1.bf16.msra.mxu0 %v302
    %319 = vmatprep.subr.bf16.mxu0 0
    %320 = vmatpush1.bf16.msra.mxu0 %v301
    %321 = vmatprep.subr.bf16.mxu0 0
    %322 = vmatpush1.bf16.msra.mxu0 %v300
    %323 = vmatprep.subr.bf16.mxu0 0
    %324 = vmatpush1.bf16.msra.mxu0 %v299
    %325 = vmatprep.subr.bf16.mxu0 0
    %326 = vmatpush1.bf16.msra.mxu0 %v298
    %327 = vmatprep.subr.bf16.mxu0 0
    %328 = vmatpush1.bf16.msra.mxu0 %v297
    %329 = vmatprep.subr.bf16.mxu0 0
    %330 = vmatpush2.bf16.msra.mxu0 0
    %331 = vmatprep.subr.bf16.mxu0 0
    %332 = vmatpush2.bf16.msra.mxu0 0
    %333 = vmatprep.subr.bf16.mxu0 0
    %334 = vmatpush2.bf16.msra.mxu0 0
    %335 = vmatprep.subr.bf16.mxu0 0
    %336 = vmatpush2.bf16.msra.mxu0 0
    %337 = vmatprep.subr.bf16.mxu0 0
    %338 = vmatpush2.bf16.msra.mxu0 0
    %339 = vmatprep.subr.bf16.mxu0 0
    %340 = vmatpush2.bf16.msra.mxu0 0
    %341 = vmatprep.subr.bf16.mxu0 0
    %342 = vmatpush2.bf16.msra.mxu0 0
    %343 = vmatprep.subr.bf16.mxu0 0
    %344 = vmatpush2.bf16.msra.mxu0 0
    %345 = vmatprep.mubr.bf16.mxu0 0
    %346 = vmatmul.mubr.bf16.gmra.mxu0 %v239
    %v347 = vpop.f32.mrf.mxu0
    %v348 = vadd.f32 %v263, %v347
    %v349 = vpop.f32.mrf.mxu0
    %v350 = vpop.f32.mrf.mxu0
    %v351 = vpop.f32.mrf.mxu0
    %352 = vdwg.mxu0
    %v353 = vmax.f32 %v348, 0.0
    %v354 = vpack.c.bf16 %v353, %v353
    %s355 = scalar_lea.vmem [#allocation5], 192
    %v356 = vld [vmem:[%s355] sm:$0xf]
    %v357 = vld [vmem:[%s355 + $0x4] sm:$0xf]
    %v358 = vld [vmem:[%s355 + $0x8] sm:$0xf]
    %v359 = vld [vmem:[%s355 + $0xc] sm:$0xf]
    %v360 = vld [vmem:[%s355 + $0x10] sm:$0xf]
    %v361 = vld [vmem:[%s355 + $0x14] sm:$0xf]
    %v362 = vld [vmem:[%s355 + $0x18] sm:$0xf]
    %v363 = vld [vmem:[%s355 + $0x1c] sm:$0xf]
    %v364 = vld [vmem:[%s355 + $0x20] sm:$0xf]
    %v365 = vld [vmem:[%s355 + $0x24] sm:$0xf]
    %v366 = vld [vmem:[%s355 + $0x28] sm:$0xf]
    %v367 = vld [vmem:[%s355 + $0x2c] sm:$0xf]
    %v368 = vld [vmem:[%s355 + $0x30] sm:$0xf]
    %v369 = vld [vmem:[%s355 + $0x34] sm:$0xf]
    %v370 = vld [vmem:[%s355 + $0x38] sm:$0xf]
    %v371 = vld [vmem:[%s355 + $0x3c] sm:$0xf]
    %s372 = scalar_lea.vmem [#allocation7], 3
    %v373 = vld [vmem:[%s372] sm:$0x1]
    %v375 = vlaneseq
    %v376 = vshrl.u32 %v375, 7
    %v377 = vsub.s32 0, %v376
    %v378 = vrot.slane %v373, %v377
    %v396 = vunpack.c.l.b16 %v356
    %v397 = vunpack.c.l.b16 %v357
    %v398 = vunpack.c.l.b16 %v358
    %v399 = vunpack.c.l.b16 %v359
    %v400 = vunpack.c.l.b16 %v360
    %v401 = vunpack.c.l.b16 %v361
    %v402 = vunpack.c.l.b16 %v362
    %v403 = vunpack.c.l.b16 %v363
    %v404 = vunpack.c.l.b16 %v364
    %v405 = vunpack.c.l.b16 %v365
    %v406 = vunpack.c.l.b16 %v366
    %v407 = vunpack.c.l.b16 %v367
    %v408 = vunpack.c.l.b16 %v368
    %v409 = vunpack.c.l.b16 %v369
    %v410 = vunpack.c.l.b16 %v370
    %v411 = vunpack.c.l.b16 %v371
    %v412 = vpack.c.b16 %v397, %v396
    %v413 = vpack.c.b16 %v399, %v398
    %v414 = vpack.c.b16 %v401, %v400
    %v415 = vpack.c.b16 %v403, %v402
    %v416 = vpack.c.b16 %v405, %v404
    %v417 = vpack.c.b16 %v407, %v406
    %v418 = vpack.c.b16 %v409, %v408
    %v419 = vpack.c.b16 %v411, %v410
    %428 = vmatprep.subr.bf16.mxu0 0
    %429 = vmatpush1.bf16.msra.mxu0 %v419
    %430 = vmatprep.subr.bf16.mxu0 0
    %431 = vmatpush1.bf16.msra.mxu0 %v418
    %432 = vmatprep.subr.bf16.mxu0 0
    %433 = vmatpush1.bf16.msra.mxu0 %v417
    %434 = vmatprep.subr.bf16.mxu0 0
    %435 = vmatpush1.bf16.msra.mxu0 %v416
    %436 = vmatprep.subr.bf16.mxu0 0
    %437 = vmatpush1.bf16.msra.mxu0 %v415
    %438 = vmatprep.subr.bf16.mxu0 0
    %439 = vmatpush1.bf16.msra.mxu0 %v414
    %440 = vmatprep.subr.bf16.mxu0 0
    %441 = vmatpush1.bf16.msra.mxu0 %v413
    %442 = vmatprep.subr.bf16.mxu0 0
    %443 = vmatpush1.bf16.msra.mxu0 %v412
    %444 = vmatprep.subr.bf16.mxu0 0
    %445 = vmatpush2.bf16.msra.mxu0 0
    %446 = vmatprep.subr.bf16.mxu0 0
    %447 = vmatpush2.bf16.msra.mxu0 0
    %448 = vmatprep.subr.bf16.mxu0 0
    %449 = vmatpush2.bf16.msra.mxu0 0
    %450 = vmatprep.subr.bf16.mxu0 0
    %451 = vmatpush2.bf16.msra.mxu0 0
    %452 = vmatprep.subr.bf16.mxu0 0
    %453 = vmatpush2.bf16.msra.mxu0 0
    %454 = vmatprep.subr.bf16.mxu0 0
    %455 = vmatpush2.bf16.msra.mxu0 0
    %456 = vmatprep.subr.bf16.mxu0 0
    %457 = vmatpush2.bf16.msra.mxu0 0
    %458 = vmatprep.subr.bf16.mxu0 0
    %459 = vmatpush2.bf16.msra.mxu0 0
    %460 = vmatprep.mubr.bf16.mxu0 0
    %461 = vmatmul.mubr.bf16.gmra.mxu0 %v354
    %v462 = vpop.f32.mrf.mxu0
    %v463 = vadd.f32 %v378, %v462
    %v464 = vpop.f32.mrf.mxu0
    %v465 = vpop.f32.mrf.mxu0
    %v466 = vpop.f32.mrf.mxu0
    %467 = vdwg.mxu0
    %v468 = vmax.f32 %v463, 0.0
    %v469 = vand.u32 2147483647, %v463
    %v470 = vsub.f32 0.0, %v469
    %v471 = vmul.f32 %v470, 1.442695
    %v472 = vpow.pop %v471
    %v473 = vadd.f32 %v472, 1.0
    %v474 = vlog2.pop %v473
    %v475 = vmul.f32 %v474, 0.6931472
    %v476 = vmul.f32 -0.5, %v472
    %v477 = vadd.f32 %v476, 1.0
    %v478 = vmul.f32 %v477, %v472
    %v479 = vand.u32 2147483647, %v472
    %vm480 = vcmp.lt.f32.partialorder %v479, 0.0004427343
    %v481 = vsel %vm480, %v478, %v475
    %v482 = vadd.f32 %v468, %v481
    %v483 = vadd.f32 %v482, 1e-06
    %v484 = vlaneseq
    %v485 = vand.u32 %v484, 127
    %v486 = vand.u32 %v485, 1
    %vm487 = vcmp.eq.s32.totalorder %v486, 1
    %v488 = vsel %vm487, %v483, %v463
    %489 = vst [vmem:[#allocation8] sm:$0xff] %v488
    // Predicated region
    $region26: #{tpu_custom_call.1} parent=1 // pred_check
      _
    $region27: #{tpu_custom_call.1} parent=1 // pred_check_branch
      %491 = sbr.rel (0) target = $region29
    $region28: #{tpu_custom_call.1} parent=1 // pred_region
      %s493 = ssub.s32 128, 128
      %494 = vsyncadd [#allocation4], %s493
      %s496 = sshll.u32 [#allocation8], 4
      %s497 = int_to_ptr.vmem [resolvable:$true] %s496
      %499 = dma.vmem_to_hbm [thread:$0]  %s497, 128, %s3, [#allocation4]
    $region29: #{tpu_custom_call.1} parent=1 // pred_fallthru
      _
    // Predicated region
    $region30: #{tpu_custom_call.1} parent=1 // pred_check
      _
    $region31: #{tpu_custom_call.1} parent=1 // pred_check_branch
      %501 = sbr.rel (0) target = $region33
    $region32: #{tpu_custom_call.1} parent=1 // pred_region
      %502 = dma.done [#allocation4], 128
    $region33: #{tpu_custom_call.1} parent=1 // pred_fallthru
      _
    %503 = vsyncpa [#allocation3], 1
    %504 = vsyncpa [#allocation6], 1
    %505 = vsyncpa [#allocation4], 1

</llo_original>
